<compile_context>
chip_gen: v7x
topology: tpu7x:2x2x1
jax: 0.10.0
libtpu: 0.0.40
codegen_flags: <defaults>
</compile_context>

<pallas_src>
import jax
import jax.numpy as jnp
from jax.experimental import pallas as pl
from jax.experimental.pallas import tpu as pltpu


def skipgram_kernel(emb_ref, w_ref, b_ref, out_ref):
    """One vocab tile of the SkipGram logits.

    emb_ref : (B, D)  bf16  VMEM -- gathered embedding rows (constant block)
    w_ref   : (D, TN) bf16  VMEM -- Linear weight tile, model-level (D, V) layout
    b_ref   : (1, TN) f32   VMEM -- Linear bias tile
    out_ref : (B, TN) f32   VMEM -- logits tile (lane-dense)
    """
    logits = jnp.dot(emb_ref[...], w_ref[...],
                     preferred_element_type=jnp.float32)
    out_ref[...] = (logits + b_ref[...]).astype(out_ref.dtype)


def _pick_vocab_tile(V, tn):
    """Largest multiple of 128 that is <= tn and divides V (keeps every output
    tile lane-dense / unmasked).  Falls back to a single full-V tile."""
    tn = max(128, min(tn, V))
    tn = (tn // 128) * 128
    while tn > 128 and V % tn != 0:
        tn -= 128
    return tn if (tn > 0 and V % tn == 0) else V


def skipgram_forward(target_word, emb_table, linear_w_dv, linear_b, *, tn=2048):
    """SkipGram forward.

    target_word : (B,)   int   -- target word ids
    emb_table   : (V, D)       -- embedding table (bf16 recommended)
    linear_w_dv : (D, V)       -- Linear weight stored transposed at the model
                                  level (mathematically out = emb @ W^T + b)
    linear_b    : (V,)   f32   -- Linear bias
    Returns logits of shape (B, V) float32.
    """
    B = target_word.shape[0]
    D, V = linear_w_dv.shape
    tn = _pick_vocab_tile(V, tn)
    grid_n = V // tn

    # Embedding lookup in the wrapper (jnp.take clamps out-of-range ids); the
    # (B, D) result is tiny and lets the vocab axis be a parallel grid axis.
    idx = target_word.astype(jnp.int32)
    embeds = jnp.take(emb_table, idx, axis=0).astype(linear_w_dv.dtype)
    bias = linear_b.reshape(1, V).astype(jnp.float32)

    # Double-buffered VMEM footprint; only raise the scoped limit when the
    # v5e default (16 MiB) would otherwise be exceeded by a very large tn.
    w_item = jnp.dtype(linear_w_dv.dtype).itemsize
    vmem_est = 2 * (D * tn * w_item + B * tn * 4 + tn * 4) + B * D * w_item
    vmem_limit = (min(2 * vmem_est, 64 * 1024 * 1024)
                  if vmem_est > 12 * 1024 * 1024 else None)

    return pl.pallas_call(
        skipgram_kernel,
        out_shape=jax.ShapeDtypeStruct((B, V), jnp.float32),
        grid_spec=pltpu.PrefetchScalarGridSpec(
            num_scalar_prefetch=0,
            grid=(grid_n,),
            in_specs=[
                pl.BlockSpec((B, D), lambda j: (0, 0)),    # gathered embeddings
                pl.BlockSpec((D, tn), lambda j: (0, j)),   # W tile, (D, V) layout
                pl.BlockSpec((1, tn), lambda j: (0, j)),   # bias tile
            ],
            out_specs=pl.BlockSpec((B, tn), lambda j: (0, j)),
        ),
        compiler_params=pltpu.CompilerParams(
            dimension_semantics=("parallel",),   # vocab tiles are independent
            vmem_limit_bytes=vmem_limit,
        ),
    )(embeds, linear_w_dv, bias)


if __name__ == "__main__":
    # Small, deterministic synthetic parameters (not a checkpoint load).
    vocab_size = 4096
    embedding_dim = 128
    batch = 8
    tile_n = 2048            # 2 vocab tiles -> exercises the grid / double buffering

    key = jax.random.PRNGKey(0)
    k_emb, k_w, k_b, k_idx = jax.random.split(key, 4)

    # bf16 model-side parameters: halves HBM bytes for the dominant W stream.
    emb_table = jax.random.normal(
        k_emb, (vocab_size, embedding_dim), jnp.float32).astype(jnp.bfloat16)
    # Linear weight stored as (D, V) at the model level (one-time layout choice).
    linear_w_dv = (jax.random.normal(
        k_w, (embedding_dim, vocab_size), jnp.float32) * 0.05).astype(jnp.bfloat16)
    linear_b = jax.random.normal(k_b, (vocab_size,), jnp.float32) * 0.01
    target_word = jax.random.randint(k_idx, (batch,), 0, vocab_size, jnp.int32)

    out = skipgram_forward(target_word, emb_table, linear_w_dv, linear_b, tn=tile_n)
    out = jax.block_until_ready(out)

    # Pure-JAX f32 reference over the same bf16 parameters.
    ref = (jnp.take(emb_table, target_word, axis=0).astype(jnp.float32)
           @ linear_w_dv.astype(jnp.float32) + linear_b)
    assert out.shape == (batch, vocab_size)
    err = float(jnp.max(jnp.abs(out - ref)))
    assert jnp.allclose(out, ref, atol=2e-3, rtol=2e-3), err

    print("KERNEL_OK")
</pallas_src>

<mosaic_0001>
module attributes {stable_mosaic.version = 11 : i64} {
  func.func @skipgram_kernel(%arg0: i32, %arg1: memref<8x128xbf16, #tpu.memory_space<vmem>>, %arg2: memref<128x2048xbf16, #tpu.memory_space<vmem>>, %arg3: memref<1x2048xf32, #tpu.memory_space<vmem>>, %arg4: memref<8x2048xf32, #tpu.memory_space<vmem>>) attributes {dimension_semantics = [#tpu.dimension_semantics<parallel>], iteration_bounds = array<i64: 2>, scalar_prefetch = 0 : i64, scratch_operands = 0 : i64, tpu.core_type = #tpu.core_type<tc>, window_params = [{pipeline_mode = #tpu.pipeline_mode<synchronous>, transform_indices = @transform_0, window_bounds = array<i64: 8, 128>}, {transform_indices = @transform_1, window_bounds = array<i64: 128, 2048>}, {transform_indices = @transform_2, window_bounds = array<i64: 1, 2048>}, {transform_indices = @transform_3, window_bounds = array<i64: 8, 2048>}]} {
    %c0 = arith.constant 0 : index
    %c0_0 = arith.constant 0 : index
    %0 = vector.load %arg1[%c0, %c0_0] : memref<8x128xbf16, #tpu.memory_space<vmem>>, vector<8x128xbf16>
    %c0_1 = arith.constant 0 : index
    %c0_2 = arith.constant 0 : index
    %1 = vector.load %arg2[%c0_1, %c0_2] : memref<128x2048xbf16, #tpu.memory_space<vmem>>, vector<128x2048xbf16>
    %cst = arith.constant dense<0.000000e+00> : vector<8x2048xf32>
    %2 = tpu.matmul %0, %1, %cst {dimension_numbers = #tpu.dot_dimension_numbers<[1], [0], [0], [1], [0, 0, 1, 1], [], []>} : vector<8x128xbf16>, vector<128x2048xbf16>, vector<8x2048xf32> -> vector<8x2048xf32>
    %c0_3 = arith.constant 0 : index
    %c0_4 = arith.constant 0 : index
    %3 = vector.load %arg3[%c0_3, %c0_4] : memref<1x2048xf32, #tpu.memory_space<vmem>>, vector<1x2048xf32>
    %4 = vector.broadcast %3 : vector<1x2048xf32> to vector<8x2048xf32>
    %5 = arith.addf %2, %4 : vector<8x2048xf32>
    %c0_5 = arith.constant 0 : index
    %c0_6 = arith.constant 0 : index
    %6 = vector.load %arg4[%c0_5, %c0_6] : memref<8x2048xf32, #tpu.memory_space<vmem>>, vector<8x2048xf32>
    tpu.vector_store %arg4[%c0_5, %c0_6], %5 {strides = array<i32>} : memref<8x2048xf32, #tpu.memory_space<vmem>>, vector<8x2048xf32>,
    return
  }
  func.func @transform_0(%arg0: i32) -> (i32, i32) {
    %c0_i32 = arith.constant 0 : i32
    %c0_i32_0 = arith.constant 0 : i32
    %c0_i32_1 = arith.constant 0 : i32
    return %c0_i32, %c0_i32_0 : i32, i32
  }
  func.func @transform_1(%arg0: i32) -> (i32, i32) {
    %c0_i32 = arith.constant 0 : i32
    %c0_i32_0 = arith.constant 0 : i32
    return %c0_i32, %arg0 : i32, i32
  }
  func.func @transform_2(%arg0: i32) -> (i32, i32) {
    %c0_i32 = arith.constant 0 : i32
    %c0_i32_0 = arith.constant 0 : i32
    return %c0_i32, %arg0 : i32, i32
  }
  func.func @transform_3(%arg0: i32) -> (i32, i32) {
    %c0_i32 = arith.constant 0 : i32
    %c0_i32_0 = arith.constant 0 : i32
    return %c0_i32, %arg0 : i32, i32
  }
}

</mosaic_0001>

<llo_original>
// kernel: tpu_custom_call.1
$region0: #{tpu_custom_call.1}
  #allocation0 [shape = 'u32[]', space=smem, size = 0x4, offset = 0x4, fixed_abs, tag = 'smem constant byte address 0x4 - core index']
  #allocation1 [shape = 'u32[144,128]{1,0:T(1,128)}', space=vmem, size = 0x12000, scoped, tag = 'internal scratch']
  %s0 = inlined_call_operand.hbm [shape: bf16[8,128], index: 0, kind: input, shape index: {}]
  %s1 = inlined_call_operand.hbm [shape: bf16[128,4096], index: 1, kind: input, shape index: {}]
  %s2 = inlined_call_operand.hbm [shape: f32[1,4096], index: 2, kind: input, shape index: {}]
  %s3 = inlined_call_operand.hbm [shape: f32[8,4096], index: 3, kind: output, shape index: {}]
  %s4 = sld [smem:[#allocation0]]
  $region57: #{tpu_custom_call.1} parent=0
    _
  %s6 = ssub.s32 1, %s4
  %s7 = scalar_select 0, %s6, %s4
  $region1: #{tpu_custom_call.1} parent=0
    #allocation2 [shape = 'u8[2048]{0}', space=vmem, size = 0x800, scoped, tag = 'input window, operand 0, single buffered']
    #allocation3 [shape = 's32[2]{0}', space=sflag, size = 0x8, scoped, tag = 'scoped memory for tpu_custom_call.1']
    #allocation4 [shape = 's32[2]{0}', space=sflag, size = 0x8, scoped, tag = 'scoped memory for tpu_custom_call.1']
    #allocation5 [shape = 'u8[1048576]{0}', space=vmem, size = 0x100000, scoped, tag = 'input window, operand 1']
    #allocation6 [shape = 's32[2]{0}', space=sflag, size = 0x8, scoped, tag = 'scoped memory for tpu_custom_call.1']
    #allocation7 [shape = 'u8[16384]{0}', space=vmem, size = 0x4000, scoped, tag = 'input window, operand 2']
    #allocation8 [shape = 'u8[131072]{0}', space=vmem, size = 0x20000, scoped, tag = 'output window, operand 0']
    %8 = vsyncpa [#allocation3], 0
    %9 = vsyncpa [#allocation6], 0
    %s10 = scalar_lea.sflag [#allocation6], 1
    %11 = vsyncpa %s10, 0
    %12 = vsyncpa [#allocation4], 0
    %s13 = scalar_lea.sflag [#allocation4], 1
    %14 = vsyncpa %s13, 0
    loop: start=0, step=1, limit=4
    $region2: #{tpu_custom_call.1} parent=1 // loop_pre_header
      _
    $region3: #{tpu_custom_call.1} parent=1 // loop_header
      %s16 = sphi 0, %s20
      %p17 = scmp.ge.s32.totalorder %s16, 4
      %s24 = sphi 0, %s24
      %s26 = sphi 0, %s24
      %s27 = sphi 0, %s26
      %s41 = sphi 0, %s27
      %s47 = sphi 0, %s49
      %s50 = sphi 0, %s47
      %s51 = sphi 0, %s50
      %s67 = sphi 0, %s51
      %s73 = sphi 0, %s75
      %s76 = sphi 0, %s73
      %s77 = sphi 0, %s76
      %s93 = sphi 0, %s77
      %s99 = sphi 0, %s101
      %s102 = sphi 0, %s99
      %s103 = sphi 0, %s102
      %s119 = sphi 0, %s103
    $region4: #{tpu_custom_call.1} parent=1 // loop_header_branch
      %19 = sbr.rel (%p17) target = $region8
    $region5: #{tpu_custom_call.1} parent=1 // loop_body
      %s21 = ssub.s32 %s16, 1
      %s22 = ssub.s32 %s16, 2
      %s23 = sadd.s32 %s16, 1
      %s25 = sadd.s32 %s24, 1
      %p28 = scmp.eq.s32.totalorder %s16, 1
      %p29 = scmp.ne.s32.totalorder %s24, %s26
      %p30 = scmp.eq.s32.totalorder %s16, 0
      %p31 = por %p29, %p30
      %p32 = scmp.ne.s32.totalorder %s24, %s26
      %p33 = scmp.eq.s32.totalorder %s21, 1
      %p34 = por %p32, %p33
      %p35 = scmp.ne.s32.totalorder %s26, %s27
      %p36 = scmp.eq.s32.totalorder %s21, 0
      %p37 = por %p35, %p36
      %p38 = scmp.ne.s32.totalorder %s26, %s27
      %p39 = scmp.eq.s32.totalorder %s22, 1
      %p40 = por %p38, %p39
      %p42 = scmp.ne.s32.totalorder %s27, %s41
      %p43 = scmp.eq.s32.totalorder %s22, 0
      %p44 = por %p42, %p43
      %s45 = ssub.s32 %s16, %s23
      %p46 = scmp.eq.s32.totalorder %s45, 0
      %s48 = sadd.s32 %s47, 1
      %s49 = scalar_select %p46, %s47, %s48
      %p52 = pneg %p46
      %p53 = scmp.eq.s32.totalorder %s16, 1
      %p54 = por %p52, %p53
      %p55 = scmp.ne.s32.totalorder %s47, %s50
      %p56 = scmp.eq.s32.totalorder %s16, 0
      %p57 = por %p55, %p56
      %p58 = scmp.ne.s32.totalorder %s47, %s50
      %p59 = scmp.eq.s32.totalorder %s21, 1
      %p60 = por %p58, %p59
      %p61 = scmp.ne.s32.totalorder %s50, %s51
      %p62 = scmp.eq.s32.totalorder %s21, 0
      %p63 = por %p61, %p62
      %p64 = scmp.ne.s32.totalorder %s50, %s51
      %p65 = scmp.eq.s32.totalorder %s22, 1
      %p66 = por %p64, %p65
      %p68 = scmp.ne.s32.totalorder %s51, %s67
      %p69 = scmp.eq.s32.totalorder %s22, 0
      %p70 = por %p68, %p69
      %s71 = ssub.s32 %s16, %s23
      %p72 = scmp.eq.s32.totalorder %s71, 0
      %s74 = sadd.s32 %s73, 1
      %s75 = scalar_select %p72, %s73, %s74
      %p78 = pneg %p72
      %p79 = scmp.eq.s32.totalorder %s16, 1
      %p80 = por %p78, %p79
      %p81 = scmp.ne.s32.totalorder %s73, %s76
      %p82 = scmp.eq.s32.totalorder %s16, 0
      %p83 = por %p81, %p82
      %p84 = scmp.ne.s32.totalorder %s73, %s76
      %p85 = scmp.eq.s32.totalorder %s21, 1
      %p86 = por %p84, %p85
      %p87 = scmp.ne.s32.totalorder %s76, %s77
      %p88 = scmp.eq.s32.totalorder %s21, 0
      %p89 = por %p87, %p88
      %p90 = scmp.ne.s32.totalorder %s76, %s77
      %p91 = scmp.eq.s32.totalorder %s22, 1
      %p92 = por %p90, %p91
      %p94 = scmp.ne.s32.totalorder %s77, %s93
      %p95 = scmp.eq.s32.totalorder %s22, 0
      %p96 = por %p94, %p95
      %s97 = ssub.s32 %s16, %s23
      %p98 = scmp.eq.s32.totalorder %s97, 0
      %s100 = sadd.s32 %s99, 1
      %s101 = scalar_select %p98, %s99, %s100
      %p104 = pneg %p98
      %p105 = scmp.eq.s32.totalorder %s16, 1
      %p106 = por %p104, %p105
      %p107 = scmp.ne.s32.totalorder %s99, %s102
      %p108 = scmp.eq.s32.totalorder %s16, 0
      %p109 = por %p107, %p108
      %p110 = scmp.ne.s32.totalorder %s99, %s102
      %p111 = scmp.eq.s32.totalorder %s21, 1
      %p112 = por %p110, %p111
      %p113 = scmp.ne.s32.totalorder %s102, %s103
      %p114 = scmp.eq.s32.totalorder %s21, 0
      %p115 = por %p113, %p114
      %p116 = scmp.ne.s32.totalorder %s102, %s103
      %p117 = scmp.eq.s32.totalorder %s22, 1
      %p118 = por %p116, %p117
      %p120 = scmp.ne.s32.totalorder %s103, %s119
      %p121 = scmp.eq.s32.totalorder %s22, 0
      %p122 = por %p120, %p121
      %p123 = scmp.le.s32.totalorder 1, %s16
      %p124 = scmp.lt.s32.totalorder %s16, 3
      %p125 = pnand %p123, %p124
      %p126 = pneg %p125
      // Predicated region
      $region9: #{tpu_custom_call.1} parent=5 // pred_check
        _
      $region10: #{tpu_custom_call.1} parent=5 // pred_check_branch
        %128 = sbr.rel (%p125) target = $region12
      $region11: #{tpu_custom_call.1} parent=5 // pred_region
        %s129 = ssub.s32 %s16, 1
        // Predicated region
        $region13: #{tpu_custom_call.1} parent=11 // pred_check
          %p130 = pneg %p37
        $region14: #{tpu_custom_call.1} parent=11 // pred_check_branch
          %132 = sbr.rel (%p130) target = $region16
        $region15: #{tpu_custom_call.1} parent=11 // pred_region
          %s134 = ssub.s32 64, 64
          %135 = vsyncadd [#allocation3], %s134
          %s137 = sshll.u32 [#allocation2], 4
          %s138 = int_to_ptr.vmem [resolvable:$true] %s137
          %140 = dma.hbm_to_vmem [thread:$0]  %s0, 64, %s138, [#allocation3]
        $region16: #{tpu_custom_call.1} parent=11 // pred_fallthru
          _
      $region12: #{tpu_custom_call.1} parent=5 // pred_fallthru
        _
      %p141 = scmp.lt.s32.totalorder %s16, 2
      // Predicated region
      $region17: #{tpu_custom_call.1} parent=5 // pred_check
        %p142 = pneg %p141
      $region18: #{tpu_custom_call.1} parent=5 // pred_check_branch
        %144 = sbr.rel (%p142) target = $region20
      $region19: #{tpu_custom_call.1} parent=5 // pred_region
        // Predicated region
        $region21: #{tpu_custom_call.1} parent=19 // pred_check
          %p145 = pneg %p57
        $region22: #{tpu_custom_call.1} parent=19 // pred_check_branch
          %147 = sbr.rel (%p145) target = $region24
        $region23: #{tpu_custom_call.1} parent=19 // pred_region
          %s148 = sand.u32 %s16, 1
          %s149 = scalar_lea.sflag [#allocation6], %s148
          %s150 = sand.u32 %s47, 1
          %s151 = smul.addr %s150, 1024
          %s152 = scalar_lea.vmem [#allocation5], %s151
          %s153 = smul.u32 16, %s16
          %s155 = ssub.s32 16384, 16384
          %156 = vsyncadd %s149, %s155
          %s157 = smul.addr %s153, 64
          %s158 = scalar_lea.hbm %s1, %s157
          %s159 = sshll.u32 %s152, 4
          %s160 = int_to_ptr.vmem [resolvable:$true] %s159
          %165 = dma.hbm_to_vmem [thread:$0]  %s158, 16384, %s160, %s149, 2048, 1024, 64
        $region24: #{tpu_custom_call.1} parent=19 // pred_fallthru
          _
        // Predicated region
        $region25: #{tpu_custom_call.1} parent=19 // pred_check
          %p166 = pneg %p83
        $region26: #{tpu_custom_call.1} parent=19 // pred_check_branch
          %168 = sbr.rel (%p166) target = $region28
        $region27: #{tpu_custom_call.1} parent=19 // pred_region
          %s169 = sand.u32 %s16, 1
          %s170 = scalar_lea.sflag [#allocation6], %s169
          %s171 = sand.u32 %s73, 1
          %s172 = smul.addr %s171, 16
          %s173 = scalar_lea.vmem [#allocation7], %s172
          %s174 = smul.u32 16, %s16
          %s176 = ssub.s32 256, 256
          %177 = vsyncadd %s170, %s176
          %s178 = smul.addr %s174, 16
          %s179 = scalar_lea.hbm %s2, %s178
          %s181 = sshll.u32 %s173, 4
          %s182 = int_to_ptr.vmem [resolvable:$true] %s181
          %184 = dma.hbm_to_vmem [thread:$0]  %s179, 256, %s182, %s170
        $region28: #{tpu_custom_call.1} parent=19 // pred_fallthru
          _
      $region20: #{tpu_custom_call.1} parent=5 // pred_fallthru
        _
      %p185 = scmp.le.s32.totalorder 1, %s16
      %p186 = scmp.lt.s32.totalorder %s16, 3
      %p187 = pnand %p185, %p186
      %p188 = pneg %p187
      // Predicated region
      $region29: #{tpu_custom_call.1} parent=5 // pred_check
        _
      $region30: #{tpu_custom_call.1} parent=5 // pred_check_branch
        %190 = sbr.rel (%p187) target = $region32
      $region31: #{tpu_custom_call.1} parent=5 // pred_region
        %s191 = ssub.s32 %s16, 1
        // Predicated region
        $region33: #{tpu_custom_call.1} parent=31 // pred_check
          %p192 = pneg %p37
        $region34: #{tpu_custom_call.1} parent=31 // pred_check_branch
          %194 = sbr.rel (%p192) target = $region36
        $region35: #{tpu_custom_call.1} parent=31 // pred_region
          %195 = dma.done [#allocation3], 64
        $region36: #{tpu_custom_call.1} parent=31 // pred_fallthru
          _
        %s196 = sand.u32 %s21, 1
        %s197 = scalar_lea.sflag [#allocation6], %s196
        %s198 = sand.u32 %s50, 1
        %s199 = smul.addr %s198, 1024
        %s200 = scalar_lea.vmem [#allocation5], %s199
        // Predicated region
        $region37: #{tpu_custom_call.1} parent=31 // pred_check
          %p201 = pneg %p63
        $region38: #{tpu_custom_call.1} parent=31 // pred_check_branch
          %203 = sbr.rel (%p201) target = $region40
        $region39: #{tpu_custom_call.1} parent=31 // pred_region
          %204 = dma.done %s197, 16384
        $region40: #{tpu_custom_call.1} parent=31 // pred_fallthru
          _
        %s205 = sand.u32 %s21, 1
        %s206 = scalar_lea.sflag [#allocation6], %s205
        %s207 = sand.u32 %s76, 1
        %s208 = smul.addr %s207, 16
        %s209 = scalar_lea.vmem [#allocation7], %s208
        // Predicated region
        $region41: #{tpu_custom_call.1} parent=31 // pred_check
          %p210 = pneg %p89
        $region42: #{tpu_custom_call.1} parent=31 // pred_check_branch
          %212 = sbr.rel (%p210) target = $region44
        $region43: #{tpu_custom_call.1} parent=31 // pred_region
          %213 = dma.done %s206, 256
        $region44: #{tpu_custom_call.1} parent=31 // pred_fallthru
          _
        %p214 = pneg %p37
        %p215 = pneg %p34
        %s216 = sand.u32 %s21, 1
        %s217 = scalar_lea.sflag [#allocation6], %s216
        %s218 = sand.u32 %s50, 1
        %s219 = smul.addr %s218, 1024
        %s220 = scalar_lea.vmem [#allocation5], %s219
        %p221 = pneg %p63
        %p222 = pneg %p60
        %s223 = sand.u32 %s21, 1
        %s224 = scalar_lea.sflag [#allocation6], %s223
        %s225 = sand.u32 %s76, 1
        %s226 = smul.addr %s225, 16
        %s227 = scalar_lea.vmem [#allocation7], %s226
        %p228 = pneg %p89
        %p229 = pneg %p86
        %p230 = pneg %p115
        %p231 = pneg %p112
        %s232 = sand.u32 %s102, 1
        %s233 = scalar_lea.sflag [#allocation4], %s232
        %s234 = sand.u32 %s102, 1
        %s235 = smul.addr %s234, 128
        %s236 = scalar_lea.vmem [#allocation8], %s235
        %s237 = smul.u32 16, %s21
        %s238 = smul.u32 16, %s21
        %s239 = smul.u32 16, %s21
        %v241 = vld [vmem:[#allocation2] sm:$0xf]
        %v242 = vld [vmem:[%s200] sm:$0xff]
        %v243 = vld [vmem:[%s200 + $0x8] sm:$0xff]
        %v244 = vld [vmem:[%s200 + $0x10] sm:$0xff]
        %v245 = vld [vmem:[%s200 + $0x18] sm:$0xff]
        %v246 = vld [vmem:[%s200 + $0x20] sm:$0xff]
        %v247 = vld [vmem:[%s200 + $0x28] sm:$0xff]
        %v248 = vld [vmem:[%s200 + $0x30] sm:$0xff]
        %v249 = vld [vmem:[%s200 + $0x38] sm:$0xff]
        %v250 = vld [vmem:[%s200 + $0x40] sm:$0xff]
        %v251 = vld [vmem:[%s200 + $0x48] sm:$0xff]
        %v252 = vld [vmem:[%s200 + $0x50] sm:$0xff]
        %v253 = vld [vmem:[%s200 + $0x58] sm:$0xff]
        %v254 = vld [vmem:[%s200 + $0x60] sm:$0xff]
        %v255 = vld [vmem:[%s200 + $0x68] sm:$0xff]
        %v256 = vld [vmem:[%s200 + $0x70] sm:$0xff]
        %v257 = vld [vmem:[%s200 + $0x78] sm:$0xff]
        %v258 = vld [vmem:[%s200 + $0x80] sm:$0xff]
        %v259 = vld [vmem:[%s200 + $0x88] sm:$0xff]
        %v260 = vld [vmem:[%s200 + $0x90] sm:$0xff]
        %v261 = vld [vmem:[%s200 + $0x98] sm:$0xff]
        %v262 = vld [vmem:[%s200 + $0xa0] sm:$0xff]
        %v263 = vld [vmem:[%s200 + $0xa8] sm:$0xff]
        %v264 = vld [vmem:[%s200 + $0xb0] sm:$0xff]
        %v265 = vld [vmem:[%s200 + $0xb8] sm:$0xff]
        %v266 = vld [vmem:[%s200 + $0xc0] sm:$0xff]
        %v267 = vld [vmem:[%s200 + $0xc8] sm:$0xff]
        %v268 = vld [vmem:[%s200 + $0xd0] sm:$0xff]
        %v269 = vld [vmem:[%s200 + $0xd8] sm:$0xff]
        %v270 = vld [vmem:[%s200 + $0xe0] sm:$0xff]
        %v271 = vld [vmem:[%s200 + $0xe8] sm:$0xff]
        %v272 = vld [vmem:[%s200 + $0xf0] sm:$0xff]
        %v273 = vld [vmem:[%s200 + $0xf8] sm:$0xff]
        %v274 = vld [vmem:[%s200 + $0x100] sm:$0xff]
        %v275 = vld [vmem:[%s200 + $0x108] sm:$0xff]
        %v276 = vld [vmem:[%s200 + $0x110] sm:$0xff]
        %v277 = vld [vmem:[%s200 + $0x118] sm:$0xff]
        %v278 = vld [vmem:[%s200 + $0x120] sm:$0xff]
        %v279 = vld [vmem:[%s200 + $0x128] sm:$0xff]
        %v280 = vld [vmem:[%s200 + $0x130] sm:$0xff]
        %v281 = vld [vmem:[%s200 + $0x138] sm:$0xff]
        %v282 = vld [vmem:[%s200 + $0x140] sm:$0xff]
        %v283 = vld [vmem:[%s200 + $0x148] sm:$0xff]
        %v284 = vld [vmem:[%s200 + $0x150] sm:$0xff]
        %v285 = vld [vmem:[%s200 + $0x158] sm:$0xff]
        %v286 = vld [vmem:[%s200 + $0x160] sm:$0xff]
        %v287 = vld [vmem:[%s200 + $0x168] sm:$0xff]
        %v288 = vld [vmem:[%s200 + $0x170] sm:$0xff]
        %v289 = vld [vmem:[%s200 + $0x178] sm:$0xff]
        %v290 = vld [vmem:[%s200 + $0x180] sm:$0xff]
        %v291 = vld [vmem:[%s200 + $0x188] sm:$0xff]
        %v292 = vld [vmem:[%s200 + $0x190] sm:$0xff]
        %v293 = vld [vmem:[%s200 + $0x198] sm:$0xff]
        %v294 = vld [vmem:[%s200 + $0x1a0] sm:$0xff]
        %v295 = vld [vmem:[%s200 + $0x1a8] sm:$0xff]
        %v296 = vld [vmem:[%s200 + $0x1b0] sm:$0xff]
        %v297 = vld [vmem:[%s200 + $0x1b8] sm:$0xff]
        %v298 = vld [vmem:[%s200 + $0x1c0] sm:$0xff]
        %v299 = vld [vmem:[%s200 + $0x1c8] sm:$0xff]
        %v300 = vld [vmem:[%s200 + $0x1d0] sm:$0xff]
        %v301 = vld [vmem:[%s200 + $0x1d8] sm:$0xff]
        %v302 = vld [vmem:[%s200 + $0x1e0] sm:$0xff]
        %v303 = vld [vmem:[%s200 + $0x1e8] sm:$0xff]
        %v304 = vld [vmem:[%s200 + $0x1f0] sm:$0xff]
        %v305 = vld [vmem:[%s200 + $0x1f8] sm:$0xff]
        %v306 = vld [vmem:[%s200 + $0x200] sm:$0xff]
        %v307 = vld [vmem:[%s200 + $0x208] sm:$0xff]
        %v308 = vld [vmem:[%s200 + $0x210] sm:$0xff]
        %v309 = vld [vmem:[%s200 + $0x218] sm:$0xff]
        %v310 = vld [vmem:[%s200 + $0x220] sm:$0xff]
        %v311 = vld [vmem:[%s200 + $0x228] sm:$0xff]
        %v312 = vld [vmem:[%s200 + $0x230] sm:$0xff]
        %v313 = vld [vmem:[%s200 + $0x238] sm:$0xff]
        %v314 = vld [vmem:[%s200 + $0x240] sm:$0xff]
        %v315 = vld [vmem:[%s200 + $0x248] sm:$0xff]
        %v316 = vld [vmem:[%s200 + $0x250] sm:$0xff]
        %v317 = vld [vmem:[%s200 + $0x258] sm:$0xff]
        %v318 = vld [vmem:[%s200 + $0x260] sm:$0xff]
        %v319 = vld [vmem:[%s200 + $0x268] sm:$0xff]
        %v320 = vld [vmem:[%s200 + $0x270] sm:$0xff]
        %v321 = vld [vmem:[%s200 + $0x278] sm:$0xff]
        %v322 = vld [vmem:[%s200 + $0x280] sm:$0xff]
        %v323 = vld [vmem:[%s200 + $0x288] sm:$0xff]
        %v324 = vld [vmem:[%s200 + $0x290] sm:$0xff]
        %v325 = vld [vmem:[%s200 + $0x298] sm:$0xff]
        %v326 = vld [vmem:[%s200 + $0x2a0] sm:$0xff]
        %v327 = vld [vmem:[%s200 + $0x2a8] sm:$0xff]
        %v328 = vld [vmem:[%s200 + $0x2b0] sm:$0xff]
        %v329 = vld [vmem:[%s200 + $0x2b8] sm:$0xff]
        %v330 = vld [vmem:[%s200 + $0x2c0] sm:$0xff]
        %v331 = vld [vmem:[%s200 + $0x2c8] sm:$0xff]
        %v332 = vld [vmem:[%s200 + $0x2d0] sm:$0xff]
        %v333 = vld [vmem:[%s200 + $0x2d8] sm:$0xff]
        %v334 = vld [vmem:[%s200 + $0x2e0] sm:$0xff]
        %v335 = vld [vmem:[%s200 + $0x2e8] sm:$0xff]
        %v336 = vld [vmem:[%s200 + $0x2f0] sm:$0xff]
        %v337 = vld [vmem:[%s200 + $0x2f8] sm:$0xff]
        %v338 = vld [vmem:[%s200 + $0x300] sm:$0xff]
        %v339 = vld [vmem:[%s200 + $0x308] sm:$0xff]
        %v340 = vld [vmem:[%s200 + $0x310] sm:$0xff]
        %v341 = vld [vmem:[%s200 + $0x318] sm:$0xff]
        %v342 = vld [vmem:[%s200 + $0x320] sm:$0xff]
        %v343 = vld [vmem:[%s200 + $0x328] sm:$0xff]
        %v344 = vld [vmem:[%s200 + $0x330] sm:$0xff]
        %v345 = vld [vmem:[%s200 + $0x338] sm:$0xff]
        %v346 = vld [vmem:[%s200 + $0x340] sm:$0xff]
        %v347 = vld [vmem:[%s200 + $0x348] sm:$0xff]
        %v348 = vld [vmem:[%s200 + $0x350] sm:$0xff]
        %v349 = vld [vmem:[%s200 + $0x358] sm:$0xff]
        %v350 = vld [vmem:[%s200 + $0x360] sm:$0xff]
        %v351 = vld [vmem:[%s200 + $0x368] sm:$0xff]
        %v352 = vld [vmem:[%s200 + $0x370] sm:$0xff]
        %v353 = vld [vmem:[%s200 + $0x378] sm:$0xff]
        %v354 = vld [vmem:[%s200 + $0x380] sm:$0xff]
        %v355 = vld [vmem:[%s200 + $0x388] sm:$0xff]
        %v356 = vld [vmem:[%s200 + $0x390] sm:$0xff]
        %v357 = vld [vmem:[%s200 + $0x398] sm:$0xff]
        %v358 = vld [vmem:[%s200 + $0x3a0] sm:$0xff]
        %v359 = vld [vmem:[%s200 + $0x3a8] sm:$0xff]
        %v360 = vld [vmem:[%s200 + $0x3b0] sm:$0xff]
        %v361 = vld [vmem:[%s200 + $0x3b8] sm:$0xff]
        %v362 = vld [vmem:[%s200 + $0x3c0] sm:$0xff]
        %v363 = vld [vmem:[%s200 + $0x3c8] sm:$0xff]
        %v364 = vld [vmem:[%s200 + $0x3d0] sm:$0xff]
        %v365 = vld [vmem:[%s200 + $0x3d8] sm:$0xff]
        %v366 = vld [vmem:[%s200 + $0x3e0] sm:$0xff]
        %v367 = vld [vmem:[%s200 + $0x3e8] sm:$0xff]
        %v368 = vld [vmem:[%s200 + $0x3f0] sm:$0xff]
        %v369 = vld [vmem:[%s200 + $0x3f8] sm:$0xff]
        %v370 = vld [vmem:[%s209] sm:$0xff]
        %v371 = vld [vmem:[%s209 + $0x8] sm:$0xff]
        %v374 = vlaneseq
        %v375 = vshrl.u32 %v374, 7
        %v376 = vsub.s32 0, %v375
        %v377 = vrot.slane %v370, %v376
        %v378 = vlaneseq
        %v379 = vshrl.u32 %v378, 7
        %v380 = vsub.s32 1, %v379
        %v381 = vrot.slane %v370, %v380
        %v382 = vlaneseq
        %v383 = vshrl.u32 %v382, 7
        %v384 = vsub.s32 2, %v383
        %v385 = vrot.slane %v370, %v384
        %v386 = vlaneseq
        %v387 = vshrl.u32 %v386, 7
        %v388 = vsub.s32 3, %v387
        %v389 = vrot.slane %v370, %v388
        %v390 = vlaneseq
        %v391 = vshrl.u32 %v390, 7
        %v392 = vsub.s32 4, %v391
        %v393 = vrot.slane %v370, %v392
        %v394 = vlaneseq
        %v395 = vshrl.u32 %v394, 7
        %v396 = vsub.s32 5, %v395
        %v397 = vrot.slane %v370, %v396
        %v398 = vlaneseq
        %v399 = vshrl.u32 %v398, 7
        %v400 = vsub.s32 6, %v399
        %v401 = vrot.slane %v370, %v400
        %v402 = vlaneseq
        %v403 = vshrl.u32 %v402, 7
        %v404 = vsub.s32 7, %v403
        %v405 = vrot.slane %v370, %v404
        %v406 = vlaneseq
        %v407 = vshrl.u32 %v406, 7
        %v408 = vsub.s32 0, %v407
        %v409 = vrot.slane %v371, %v408
        %v410 = vlaneseq
        %v411 = vshrl.u32 %v410, 7
        %v412 = vsub.s32 1, %v411
        %v413 = vrot.slane %v371, %v412
        %v414 = vlaneseq
        %v415 = vshrl.u32 %v414, 7
        %v416 = vsub.s32 2, %v415
        %v417 = vrot.slane %v371, %v416
        %v418 = vlaneseq
        %v419 = vshrl.u32 %v418, 7
        %v420 = vsub.s32 3, %v419
        %v421 = vrot.slane %v371, %v420
        %v422 = vlaneseq
        %v423 = vshrl.u32 %v422, 7
        %v424 = vsub.s32 4, %v423
        %v425 = vrot.slane %v371, %v424
        %v426 = vlaneseq
        %v427 = vshrl.u32 %v426, 7
        %v428 = vsub.s32 5, %v427
        %v429 = vrot.slane %v371, %v428
        %v430 = vlaneseq
        %v431 = vshrl.u32 %v430, 7
        %v432 = vsub.s32 6, %v431
        %v433 = vrot.slane %v371, %v432
        %v434 = vlaneseq
        %v435 = vshrl.u32 %v434, 7
        %v436 = vsub.s32 7, %v435
        %v437 = vrot.slane %v371, %v436
        %v582 = vunpack.c.l.b16 %v242
        %v583 = vunpack.c.h.b16 %v242
        %v584 = vunpack.c.l.b16 %v243
        %v585 = vunpack.c.h.b16 %v243
        %v586 = vunpack.c.l.b16 %v244
        %v587 = vunpack.c.h.b16 %v244
        %v588 = vunpack.c.l.b16 %v245
        %v589 = vunpack.c.h.b16 %v245
        %v590 = vunpack.c.l.b16 %v246
        %v591 = vunpack.c.h.b16 %v246
        %v592 = vunpack.c.l.b16 %v247
        %v593 = vunpack.c.h.b16 %v247
        %v594 = vunpack.c.l.b16 %v248
        %v595 = vunpack.c.h.b16 %v248
        %v596 = vunpack.c.l.b16 %v249
        %v597 = vunpack.c.h.b16 %v249
        %v598 = vunpack.c.l.b16 %v250
        %v599 = vunpack.c.h.b16 %v250
        %v600 = vunpack.c.l.b16 %v251
        %v601 = vunpack.c.h.b16 %v251
        %v602 = vunpack.c.l.b16 %v252
        %v603 = vunpack.c.h.b16 %v252
        %v604 = vunpack.c.l.b16 %v253
        %v605 = vunpack.c.h.b16 %v253
        %v606 = vunpack.c.l.b16 %v254
        %v607 = vunpack.c.h.b16 %v254
        %v608 = vunpack.c.l.b16 %v255
        %v609 = vunpack.c.h.b16 %v255
        %v610 = vunpack.c.l.b16 %v256
        %v611 = vunpack.c.h.b16 %v256
        %v612 = vunpack.c.l.b16 %v257
        %v613 = vunpack.c.h.b16 %v257
        %v614 = vunpack.c.l.b16 %v258
        %v615 = vunpack.c.h.b16 %v258
        %v616 = vunpack.c.l.b16 %v259
        %v617 = vunpack.c.h.b16 %v259
        %v618 = vunpack.c.l.b16 %v260
        %v619 = vunpack.c.h.b16 %v260
        %v620 = vunpack.c.l.b16 %v261
        %v621 = vunpack.c.h.b16 %v261
        %v622 = vunpack.c.l.b16 %v262
        %v623 = vunpack.c.h.b16 %v262
        %v624 = vunpack.c.l.b16 %v263
        %v625 = vunpack.c.h.b16 %v263
        %v626 = vunpack.c.l.b16 %v264
        %v627 = vunpack.c.h.b16 %v264
        %v628 = vunpack.c.l.b16 %v265
        %v629 = vunpack.c.h.b16 %v265
        %v630 = vunpack.c.l.b16 %v266
        %v631 = vunpack.c.h.b16 %v266
        %v632 = vunpack.c.l.b16 %v267
        %v633 = vunpack.c.h.b16 %v267
        %v634 = vunpack.c.l.b16 %v268
        %v635 = vunpack.c.h.b16 %v268
        %v636 = vunpack.c.l.b16 %v269
        %v637 = vunpack.c.h.b16 %v269
        %v638 = vunpack.c.l.b16 %v270
        %v639 = vunpack.c.h.b16 %v270
        %v640 = vunpack.c.l.b16 %v271
        %v641 = vunpack.c.h.b16 %v271
        %v642 = vunpack.c.l.b16 %v272
        %v643 = vunpack.c.h.b16 %v272
        %v644 = vunpack.c.l.b16 %v273
        %v645 = vunpack.c.h.b16 %v273
        %v646 = vunpack.c.l.b16 %v274
        %v647 = vunpack.c.h.b16 %v274
        %v648 = vunpack.c.l.b16 %v275
        %v649 = vunpack.c.h.b16 %v275
        %v650 = vunpack.c.l.b16 %v276
        %v651 = vunpack.c.h.b16 %v276
        %v652 = vunpack.c.l.b16 %v277
        %v653 = vunpack.c.h.b16 %v277
        %v654 = vunpack.c.l.b16 %v278
        %v655 = vunpack.c.h.b16 %v278
        %v656 = vunpack.c.l.b16 %v279
        %v657 = vunpack.c.h.b16 %v279
        %v658 = vunpack.c.l.b16 %v280
        %v659 = vunpack.c.h.b16 %v280
        %v660 = vunpack.c.l.b16 %v281
        %v661 = vunpack.c.h.b16 %v281
        %v662 = vunpack.c.l.b16 %v282
        %v663 = vunpack.c.h.b16 %v282
        %v664 = vunpack.c.l.b16 %v283
        %v665 = vunpack.c.h.b16 %v283
        %v666 = vunpack.c.l.b16 %v284
        %v667 = vunpack.c.h.b16 %v284
        %v668 = vunpack.c.l.b16 %v285
        %v669 = vunpack.c.h.b16 %v285
        %v670 = vunpack.c.l.b16 %v286
        %v671 = vunpack.c.h.b16 %v286
        %v672 = vunpack.c.l.b16 %v287
        %v673 = vunpack.c.h.b16 %v287
        %v674 = vunpack.c.l.b16 %v288
        %v675 = vunpack.c.h.b16 %v288
        %v676 = vunpack.c.l.b16 %v289
        %v677 = vunpack.c.h.b16 %v289
        %v678 = vunpack.c.l.b16 %v290
        %v679 = vunpack.c.h.b16 %v290
        %v680 = vunpack.c.l.b16 %v291
        %v681 = vunpack.c.h.b16 %v291
        %v682 = vunpack.c.l.b16 %v292
        %v683 = vunpack.c.h.b16 %v292
        %v684 = vunpack.c.l.b16 %v293
        %v685 = vunpack.c.h.b16 %v293
        %v686 = vunpack.c.l.b16 %v294
        %v687 = vunpack.c.h.b16 %v294
        %v688 = vunpack.c.l.b16 %v295
        %v689 = vunpack.c.h.b16 %v295
        %v690 = vunpack.c.l.b16 %v296
        %v691 = vunpack.c.h.b16 %v296
        %v692 = vunpack.c.l.b16 %v297
        %v693 = vunpack.c.h.b16 %v297
        %v694 = vunpack.c.l.b16 %v298
        %v695 = vunpack.c.h.b16 %v298
        %v696 = vunpack.c.l.b16 %v299
        %v697 = vunpack.c.h.b16 %v299
        %v698 = vunpack.c.l.b16 %v300
        %v699 = vunpack.c.h.b16 %v300
        %v700 = vunpack.c.l.b16 %v301
        %v701 = vunpack.c.h.b16 %v301
        %v702 = vunpack.c.l.b16 %v302
        %v703 = vunpack.c.h.b16 %v302
        %v704 = vunpack.c.l.b16 %v303
        %v705 = vunpack.c.h.b16 %v303
        %v706 = vunpack.c.l.b16 %v304
        %v707 = vunpack.c.h.b16 %v304
        %v708 = vunpack.c.l.b16 %v305
        %v709 = vunpack.c.h.b16 %v305
        %v710 = vunpack.c.l.b16 %v306
        %v711 = vunpack.c.h.b16 %v306
        %v712 = vunpack.c.l.b16 %v307
        %v713 = vunpack.c.h.b16 %v307
        %v714 = vunpack.c.l.b16 %v308
        %v715 = vunpack.c.h.b16 %v308
        %v716 = vunpack.c.l.b16 %v309
        %v717 = vunpack.c.h.b16 %v309
        %v718 = vunpack.c.l.b16 %v310
        %v719 = vunpack.c.h.b16 %v310
        %v720 = vunpack.c.l.b16 %v311
        %v721 = vunpack.c.h.b16 %v311
        %v722 = vunpack.c.l.b16 %v312
        %v723 = vunpack.c.h.b16 %v312
        %v724 = vunpack.c.l.b16 %v313
        %v725 = vunpack.c.h.b16 %v313
        %v726 = vunpack.c.l.b16 %v314
        %v727 = vunpack.c.h.b16 %v314
        %v728 = vunpack.c.l.b16 %v315
        %v729 = vunpack.c.h.b16 %v315
        %v730 = vunpack.c.l.b16 %v316
        %v731 = vunpack.c.h.b16 %v316
        %v732 = vunpack.c.l.b16 %v317
        %v733 = vunpack.c.h.b16 %v317
        %v734 = vunpack.c.l.b16 %v318
        %v735 = vunpack.c.h.b16 %v318
        %v736 = vunpack.c.l.b16 %v319
        %v737 = vunpack.c.h.b16 %v319
        %v738 = vunpack.c.l.b16 %v320
        %v739 = vunpack.c.h.b16 %v320
        %v740 = vunpack.c.l.b16 %v321
        %v741 = vunpack.c.h.b16 %v321
        %v742 = vunpack.c.l.b16 %v322
        %v743 = vunpack.c.h.b16 %v322
        %v744 = vunpack.c.l.b16 %v323
        %v745 = vunpack.c.h.b16 %v323
        %v746 = vunpack.c.l.b16 %v324
        %v747 = vunpack.c.h.b16 %v324
        %v748 = vunpack.c.l.b16 %v325
        %v749 = vunpack.c.h.b16 %v325
        %v750 = vunpack.c.l.b16 %v326
        %v751 = vunpack.c.h.b16 %v326
        %v752 = vunpack.c.l.b16 %v327
        %v753 = vunpack.c.h.b16 %v327
        %v754 = vunpack.c.l.b16 %v328
        %v755 = vunpack.c.h.b16 %v328
        %v756 = vunpack.c.l.b16 %v329
        %v757 = vunpack.c.h.b16 %v329
        %v758 = vunpack.c.l.b16 %v330
        %v759 = vunpack.c.h.b16 %v330
        %v760 = vunpack.c.l.b16 %v331
        %v761 = vunpack.c.h.b16 %v331
        %v762 = vunpack.c.l.b16 %v332
        %v763 = vunpack.c.h.b16 %v332
        %v764 = vunpack.c.l.b16 %v333
        %v765 = vunpack.c.h.b16 %v333
        %v766 = vunpack.c.l.b16 %v334
        %v767 = vunpack.c.h.b16 %v334
        %v768 = vunpack.c.l.b16 %v335
        %v769 = vunpack.c.h.b16 %v335
        %v770 = vunpack.c.l.b16 %v336
        %v771 = vunpack.c.h.b16 %v336
        %v772 = vunpack.c.l.b16 %v337
        %v773 = vunpack.c.h.b16 %v337
        %v774 = vunpack.c.l.b16 %v338
        %v775 = vunpack.c.h.b16 %v338
        %v776 = vunpack.c.l.b16 %v339
        %v777 = vunpack.c.h.b16 %v339
        %v778 = vunpack.c.l.b16 %v340
        %v779 = vunpack.c.h.b16 %v340
        %v780 = vunpack.c.l.b16 %v341
        %v781 = vunpack.c.h.b16 %v341
        %v782 = vunpack.c.l.b16 %v342
        %v783 = vunpack.c.h.b16 %v342
        %v784 = vunpack.c.l.b16 %v343
        %v785 = vunpack.c.h.b16 %v343
        %v786 = vunpack.c.l.b16 %v344
        %v787 = vunpack.c.h.b16 %v344
        %v788 = vunpack.c.l.b16 %v345
        %v789 = vunpack.c.h.b16 %v345
        %v790 = vunpack.c.l.b16 %v346
        %v791 = vunpack.c.h.b16 %v346
        %v792 = vunpack.c.l.b16 %v347
        %v793 = vunpack.c.h.b16 %v347
        %v794 = vunpack.c.l.b16 %v348
        %v795 = vunpack.c.h.b16 %v348
        %v796 = vunpack.c.l.b16 %v349
        %v797 = vunpack.c.h.b16 %v349
        %v798 = vunpack.c.l.b16 %v350
        %v799 = vunpack.c.h.b16 %v350
        %v800 = vunpack.c.l.b16 %v351
        %v801 = vunpack.c.h.b16 %v351
        %v802 = vunpack.c.l.b16 %v352
        %v803 = vunpack.c.h.b16 %v352
        %v804 = vunpack.c.l.b16 %v353
        %v805 = vunpack.c.h.b16 %v353
        %v806 = vunpack.c.l.b16 %v354
        %v807 = vunpack.c.h.b16 %v354
        %v808 = vunpack.c.l.b16 %v355
        %v809 = vunpack.c.h.b16 %v355
        %v810 = vunpack.c.l.b16 %v356
        %v811 = vunpack.c.h.b16 %v356
        %v812 = vunpack.c.l.b16 %v357
        %v813 = vunpack.c.h.b16 %v357
        %v814 = vunpack.c.l.b16 %v358
        %v815 = vunpack.c.h.b16 %v358
        %v816 = vunpack.c.l.b16 %v359
        %v817 = vunpack.c.h.b16 %v359
        %v818 = vunpack.c.l.b16 %v360
        %v819 = vunpack.c.h.b16 %v360
        %v820 = vunpack.c.l.b16 %v361
        %v821 = vunpack.c.h.b16 %v361
        %v822 = vunpack.c.l.b16 %v362
        %v823 = vunpack.c.h.b16 %v362
        %v824 = vunpack.c.l.b16 %v363
        %v825 = vunpack.c.h.b16 %v363
        %v826 = vunpack.c.l.b16 %v364
        %v827 = vunpack.c.h.b16 %v364
        %v828 = vunpack.c.l.b16 %v365
        %v829 = vunpack.c.h.b16 %v365
        %v830 = vunpack.c.l.b16 %v366
        %v831 = vunpack.c.h.b16 %v366
        %v832 = vunpack.c.l.b16 %v367
        %v833 = vunpack.c.h.b16 %v367
        %v834 = vunpack.c.l.b16 %v368
        %v835 = vunpack.c.h.b16 %v368
        %v836 = vunpack.c.l.b16 %v369
        %v837 = vunpack.c.h.b16 %v369
        %v838 = vpack.c.b16 %v598, %v582
        %v839 = vpack.c.b16 %v599, %v583
        %v840 = vpack.c.b16 %v600, %v584
        %v841 = vpack.c.b16 %v601, %v585
        %v842 = vpack.c.b16 %v602, %v586
        %v843 = vpack.c.b16 %v603, %v587
        %v844 = vpack.c.b16 %v604, %v588
        %v845 = vpack.c.b16 %v605, %v589
        %v846 = vpack.c.b16 %v606, %v590
        %v847 = vpack.c.b16 %v607, %v591
        %v848 = vpack.c.b16 %v608, %v592
        %v849 = vpack.c.b16 %v609, %v593
        %v850 = vpack.c.b16 %v610, %v594
        %v851 = vpack.c.b16 %v611, %v595
        %v852 = vpack.c.b16 %v612, %v596
        %v853 = vpack.c.b16 %v613, %v597
        %v854 = vpack.c.b16 %v630, %v614
        %v855 = vpack.c.b16 %v631, %v615
        %v856 = vpack.c.b16 %v632, %v616
        %v857 = vpack.c.b16 %v633, %v617
        %v858 = vpack.c.b16 %v634, %v618
        %v859 = vpack.c.b16 %v635, %v619
        %v860 = vpack.c.b16 %v636, %v620
        %v861 = vpack.c.b16 %v637, %v621
        %v862 = vpack.c.b16 %v638, %v622
        %v863 = vpack.c.b16 %v639, %v623
        %v864 = vpack.c.b16 %v640, %v624
        %v865 = vpack.c.b16 %v641, %v625
        %v866 = vpack.c.b16 %v642, %v626
        %v867 = vpack.c.b16 %v643, %v627
        %v868 = vpack.c.b16 %v644, %v628
        %v869 = vpack.c.b16 %v645, %v629
        %v870 = vpack.c.b16 %v662, %v646
        %v871 = vpack.c.b16 %v663, %v647
        %v872 = vpack.c.b16 %v664, %v648
        %v873 = vpack.c.b16 %v665, %v649
        %v874 = vpack.c.b16 %v666, %v650
        %v875 = vpack.c.b16 %v667, %v651
        %v876 = vpack.c.b16 %v668, %v652
        %v877 = vpack.c.b16 %v669, %v653
        %v878 = vpack.c.b16 %v670, %v654
        %v879 = vpack.c.b16 %v671, %v655
        %v880 = vpack.c.b16 %v672, %v656
        %v881 = vpack.c.b16 %v673, %v657
        %v882 = vpack.c.b16 %v674, %v658
        %v883 = vpack.c.b16 %v675, %v659
        %v884 = vpack.c.b16 %v676, %v660
        %v885 = vpack.c.b16 %v677, %v661
        %v886 = vpack.c.b16 %v694, %v678
        %v887 = vpack.c.b16 %v695, %v679
        %v888 = vpack.c.b16 %v696, %v680
        %v889 = vpack.c.b16 %v697, %v681
        %v890 = vpack.c.b16 %v698, %v682
        %v891 = vpack.c.b16 %v699, %v683
        %v892 = vpack.c.b16 %v700, %v684
        %v893 = vpack.c.b16 %v701, %v685
        %v894 = vpack.c.b16 %v702, %v686
        %v895 = vpack.c.b16 %v703, %v687
        %v896 = vpack.c.b16 %v704, %v688
        %v897 = vpack.c.b16 %v705, %v689
        %v898 = vpack.c.b16 %v706, %v690
        %v899 = vpack.c.b16 %v707, %v691
        %v900 = vpack.c.b16 %v708, %v692
        %v901 = vpack.c.b16 %v709, %v693
        %v902 = vpack.c.b16 %v726, %v710
        %v903 = vpack.c.b16 %v727, %v711
        %v904 = vpack.c.b16 %v728, %v712
        %v905 = vpack.c.b16 %v729, %v713
        %v906 = vpack.c.b16 %v730, %v714
        %v907 = vpack.c.b16 %v731, %v715
        %v908 = vpack.c.b16 %v732, %v716
        %v909 = vpack.c.b16 %v733, %v717
        %v910 = vpack.c.b16 %v734, %v718
        %v911 = vpack.c.b16 %v735, %v719
        %v912 = vpack.c.b16 %v736, %v720
        %v913 = vpack.c.b16 %v737, %v721
        %v914 = vpack.c.b16 %v738, %v722
        %v915 = vpack.c.b16 %v739, %v723
        %v916 = vpack.c.b16 %v740, %v724
        %v917 = vpack.c.b16 %v741, %v725
        %v918 = vpack.c.b16 %v758, %v742
        %v919 = vpack.c.b16 %v759, %v743
        %v920 = vpack.c.b16 %v760, %v744
        %v921 = vpack.c.b16 %v761, %v745
        %v922 = vpack.c.b16 %v762, %v746
        %v923 = vpack.c.b16 %v763, %v747
        %v924 = vpack.c.b16 %v764, %v748
        %v925 = vpack.c.b16 %v765, %v749
        %v926 = vpack.c.b16 %v766, %v750
        %v927 = vpack.c.b16 %v767, %v751
        %v928 = vpack.c.b16 %v768, %v752
        %v929 = vpack.c.b16 %v769, %v753
        %v930 = vpack.c.b16 %v770, %v754
        %v931 = vpack.c.b16 %v771, %v755
        %v932 = vpack.c.b16 %v772, %v756
        %v933 = vpack.c.b16 %v773, %v757
        %v934 = vpack.c.b16 %v790, %v774
        %v935 = vpack.c.b16 %v791, %v775
        %v936 = vpack.c.b16 %v792, %v776
        %v937 = vpack.c.b16 %v793, %v777
        %v938 = vpack.c.b16 %v794, %v778
        %v939 = vpack.c.b16 %v795, %v779
        %v940 = vpack.c.b16 %v796, %v780
        %v941 = vpack.c.b16 %v797, %v781
        %v942 = vpack.c.b16 %v798, %v782
        %v943 = vpack.c.b16 %v799, %v783
        %v944 = vpack.c.b16 %v800, %v784
        %v945 = vpack.c.b16 %v801, %v785
        %v946 = vpack.c.b16 %v802, %v786
        %v947 = vpack.c.b16 %v803, %v787
        %v948 = vpack.c.b16 %v804, %v788
        %v949 = vpack.c.b16 %v805, %v789
        %v950 = vpack.c.b16 %v822, %v806
        %v951 = vpack.c.b16 %v823, %v807
        %v952 = vpack.c.b16 %v824, %v808
        %v953 = vpack.c.b16 %v825, %v809
        %v954 = vpack.c.b16 %v826, %v810
        %v955 = vpack.c.b16 %v827, %v811
        %v956 = vpack.c.b16 %v828, %v812
        %v957 = vpack.c.b16 %v829, %v813
        %v958 = vpack.c.b16 %v830, %v814
        %v959 = vpack.c.b16 %v831, %v815
        %v960 = vpack.c.b16 %v832, %v816
        %v961 = vpack.c.b16 %v833, %v817
        %v962 = vpack.c.b16 %v834, %v818
        %v963 = vpack.c.b16 %v835, %v819
        %v964 = vpack.c.b16 %v836, %v820
        %v965 = vpack.c.b16 %v837, %v821
        %1094 = vmatprep.subr.bf16.mxu0 %v839
        %1095 = vmatpush1.bf16.msra.mxu0 %v838
        %1096 = vmatprep.subr.bf16.mxu0 %v855
        %1097 = vmatpush1.bf16.msra.mxu0 %v854
        %1098 = vmatprep.subr.bf16.mxu0 %v871
        %1099 = vmatpush1.bf16.msra.mxu0 %v870
        %1100 = vmatprep.subr.bf16.mxu0 %v887
        %1101 = vmatpush1.bf16.msra.mxu0 %v886
        %1102 = vmatprep.subr.bf16.mxu0 %v903
        %1103 = vmatpush1.bf16.msra.mxu0 %v902
        %1104 = vmatprep.subr.bf16.mxu0 %v919
        %1105 = vmatpush1.bf16.msra.mxu0 %v918
        %1106 = vmatprep.subr.bf16.mxu0 %v935
        %1107 = vmatpush1.bf16.msra.mxu0 %v934
        %1108 = vmatprep.subr.bf16.mxu0 %v951
        %1109 = vmatpush1.bf16.msra.mxu0 %v950
        %1110 = vmatprep.subr.bf16.mxu0 0
        %1111 = vmatpush1.bf16.msra.mxu0 0
        %1112 = vmatprep.subr.bf16.mxu0 0
        %1113 = vmatpush1.bf16.msra.mxu0 0
        %1114 = vmatprep.subr.bf16.mxu0 0
        %1115 = vmatpush1.bf16.msra.mxu0 0
        %1116 = vmatprep.subr.bf16.mxu0 0
        %1117 = vmatpush1.bf16.msra.mxu0 0
        %1118 = vmatprep.subr.bf16.mxu0 0
        %1119 = vmatpush1.bf16.msra.mxu0 0
        %1120 = vmatprep.subr.bf16.mxu0 0
        %1121 = vmatpush1.bf16.msra.mxu0 0
        %1122 = vmatprep.subr.bf16.mxu0 0
        %1123 = vmatpush1.bf16.msra.mxu0 0
        %1124 = vmatprep.subr.bf16.mxu0 0
        %1125 = vmatpush1.bf16.msra.mxu0 0
        %1126 = vmatprep.mubr.bf16.mxu0 0
        %1127 = vmatmul.mubr.bf16.gmra.mrb[0].mxu0 %v241
        %v1128 = vpop.f32.mrb[0].mxu0
        %v1129 = vadd.f32 %v377, %v1128
        %v1130 = vpop.f32.mrb[0].mxu0
        %v1131 = vadd.f32 %v381, %v1130
        %v1132 = vpop.f32.mrb[0].mxu0
        %v1133 = vpop.f32.mrb[0].mxu0
        %1134 = vdwg.mxu0
        %1135 = vmatprep.subr.bf16.mxu0 %v841
        %1136 = vmatpush1.bf16.msra.mxu0 %v840
        %1137 = vmatprep.subr.bf16.mxu0 %v857
        %1138 = vmatpush1.bf16.msra.mxu0 %v856
        %1139 = vmatprep.subr.bf16.mxu0 %v873
        %1140 = vmatpush1.bf16.msra.mxu0 %v872
        %1141 = vmatprep.subr.bf16.mxu0 %v889
        %1142 = vmatpush1.bf16.msra.mxu0 %v888
        %1143 = vmatprep.subr.bf16.mxu0 %v905
        %1144 = vmatpush1.bf16.msra.mxu0 %v904
        %1145 = vmatprep.subr.bf16.mxu0 %v921
        %1146 = vmatpush1.bf16.msra.mxu0 %v920
        %1147 = vmatprep.subr.bf16.mxu0 %v937
        %1148 = vmatpush1.bf16.msra.mxu0 %v936
        %1149 = vmatprep.subr.bf16.mxu0 %v953
        %1150 = vmatpush1.bf16.msra.mxu0 %v952
        %1151 = vmatprep.subr.bf16.mxu0 0
        %1152 = vmatpush1.bf16.msra.mxu0 0
        %1153 = vmatprep.subr.bf16.mxu0 0
        %1154 = vmatpush1.bf16.msra.mxu0 0
        %1155 = vmatprep.subr.bf16.mxu0 0
        %1156 = vmatpush1.bf16.msra.mxu0 0
        %1157 = vmatprep.subr.bf16.mxu0 0
        %1158 = vmatpush1.bf16.msra.mxu0 0
        %1159 = vmatprep.subr.bf16.mxu0 0
        %1160 = vmatpush1.bf16.msra.mxu0 0
        %1161 = vmatprep.subr.bf16.mxu0 0
        %1162 = vmatpush1.bf16.msra.mxu0 0
        %1163 = vmatprep.subr.bf16.mxu0 0
        %1164 = vmatpush1.bf16.msra.mxu0 0
        %1165 = vmatprep.subr.bf16.mxu0 0
        %1166 = vmatpush1.bf16.msra.mxu0 0
        %1167 = vmatprep.mubr.bf16.mxu0 0
        %1168 = vmatmul.mubr.bf16.gmra.mrb[0].mxu0 %v241
        %v1169 = vpop.f32.mrb[0].mxu0
        %v1170 = vadd.f32 %v385, %v1169
        %v1171 = vpop.f32.mrb[0].mxu0
        %v1172 = vadd.f32 %v389, %v1171
        %v1173 = vpop.f32.mrb[0].mxu0
        %v1174 = vpop.f32.mrb[0].mxu0
        %1175 = vdwg.mxu0
        %1176 = vmatprep.subr.bf16.mxu0 %v843
        %1177 = vmatpush1.bf16.msra.mxu0 %v842
        %1178 = vmatprep.subr.bf16.mxu0 %v859
        %1179 = vmatpush1.bf16.msra.mxu0 %v858
        %1180 = vmatprep.subr.bf16.mxu0 %v875
        %1181 = vmatpush1.bf16.msra.mxu0 %v874
        %1182 = vmatprep.subr.bf16.mxu0 %v891
        %1183 = vmatpush1.bf16.msra.mxu0 %v890
        %1184 = vmatprep.subr.bf16.mxu0 %v907
        %1185 = vmatpush1.bf16.msra.mxu0 %v906
        %1186 = vmatprep.subr.bf16.mxu0 %v923
        %1187 = vmatpush1.bf16.msra.mxu0 %v922
        %1188 = vmatprep.subr.bf16.mxu0 %v939
        %1189 = vmatpush1.bf16.msra.mxu0 %v938
        %1190 = vmatprep.subr.bf16.mxu0 %v955
        %1191 = vmatpush1.bf16.msra.mxu0 %v954
        %1192 = vmatprep.subr.bf16.mxu0 0
        %1193 = vmatpush1.bf16.msra.mxu0 0
        %1194 = vmatprep.subr.bf16.mxu0 0
        %1195 = vmatpush1.bf16.msra.mxu0 0
        %1196 = vmatprep.subr.bf16.mxu0 0
        %1197 = vmatpush1.bf16.msra.mxu0 0
        %1198 = vmatprep.subr.bf16.mxu0 0
        %1199 = vmatpush1.bf16.msra.mxu0 0
        %1200 = vmatprep.subr.bf16.mxu0 0
        %1201 = vmatpush1.bf16.msra.mxu0 0
        %1202 = vmatprep.subr.bf16.mxu0 0
        %1203 = vmatpush1.bf16.msra.mxu0 0
        %1204 = vmatprep.subr.bf16.mxu0 0
        %1205 = vmatpush1.bf16.msra.mxu0 0
        %1206 = vmatprep.subr.bf16.mxu0 0
        %1207 = vmatpush1.bf16.msra.mxu0 0
        %1208 = vmatprep.mubr.bf16.mxu0 0
        %1209 = vmatmul.mubr.bf16.gmra.mrb[0].mxu0 %v241
        %v1210 = vpop.f32.mrb[0].mxu0
        %v1211 = vadd.f32 %v393, %v1210
        %v1212 = vpop.f32.mrb[0].mxu0
        %v1213 = vadd.f32 %v397, %v1212
        %v1214 = vpop.f32.mrb[0].mxu0
        %v1215 = vpop.f32.mrb[0].mxu0
        %1216 = vdwg.mxu0
        %1217 = vmatprep.subr.bf16.mxu0 %v845
        %1218 = vmatpush1.bf16.msra.mxu0 %v844
        %1219 = vmatprep.subr.bf16.mxu0 %v861
        %1220 = vmatpush1.bf16.msra.mxu0 %v860
        %1221 = vmatprep.subr.bf16.mxu0 %v877
        %1222 = vmatpush1.bf16.msra.mxu0 %v876
        %1223 = vmatprep.subr.bf16.mxu0 %v893
        %1224 = vmatpush1.bf16.msra.mxu0 %v892
        %1225 = vmatprep.subr.bf16.mxu0 %v909
        %1226 = vmatpush1.bf16.msra.mxu0 %v908
        %1227 = vmatprep.subr.bf16.mxu0 %v925
        %1228 = vmatpush1.bf16.msra.mxu0 %v924
        %1229 = vmatprep.subr.bf16.mxu0 %v941
        %1230 = vmatpush1.bf16.msra.mxu0 %v940
        %1231 = vmatprep.subr.bf16.mxu0 %v957
        %1232 = vmatpush1.bf16.msra.mxu0 %v956
        %1233 = vmatprep.subr.bf16.mxu0 0
        %1234 = vmatpush1.bf16.msra.mxu0 0
        %1235 = vmatprep.subr.bf16.mxu0 0
        %1236 = vmatpush1.bf16.msra.mxu0 0
        %1237 = vmatprep.subr.bf16.mxu0 0
        %1238 = vmatpush1.bf16.msra.mxu0 0
        %1239 = vmatprep.subr.bf16.mxu0 0
        %1240 = vmatpush1.bf16.msra.mxu0 0
        %1241 = vmatprep.subr.bf16.mxu0 0
        %1242 = vmatpush1.bf16.msra.mxu0 0
        %1243 = vmatprep.subr.bf16.mxu0 0
        %1244 = vmatpush1.bf16.msra.mxu0 0
        %1245 = vmatprep.subr.bf16.mxu0 0
        %1246 = vmatpush1.bf16.msra.mxu0 0
        %1247 = vmatprep.subr.bf16.mxu0 0
        %1248 = vmatpush1.bf16.msra.mxu0 0
        %1249 = vmatprep.mubr.bf16.mxu0 0
        %1250 = vmatmul.mubr.bf16.gmra.mrb[0].mxu0 %v241
        %v1251 = vpop.f32.mrb[0].mxu0
        %v1252 = vadd.f32 %v401, %v1251
        %v1253 = vpop.f32.mrb[0].mxu0
        %v1254 = vadd.f32 %v405, %v1253
        %v1255 = vpop.f32.mrb[0].mxu0
        %v1256 = vpop.f32.mrb[0].mxu0
        %1257 = vdwg.mxu0
        %1258 = vmatprep.subr.bf16.mxu0 %v847
        %1259 = vmatpush1.bf16.msra.mxu0 %v846
        %1260 = vmatprep.subr.bf16.mxu0 %v863
        %1261 = vmatpush1.bf16.msra.mxu0 %v862
        %1262 = vmatprep.subr.bf16.mxu0 %v879
        %1263 = vmatpush1.bf16.msra.mxu0 %v878
        %1264 = vmatprep.subr.bf16.mxu0 %v895
        %1265 = vmatpush1.bf16.msra.mxu0 %v894
        %1266 = vmatprep.subr.bf16.mxu0 %v911
        %1267 = vmatpush1.bf16.msra.mxu0 %v910
        %1268 = vmatprep.subr.bf16.mxu0 %v927
        %1269 = vmatpush1.bf16.msra.mxu0 %v926
        %1270 = vmatprep.subr.bf16.mxu0 %v943
        %1271 = vmatpush1.bf16.msra.mxu0 %v942
        %1272 = vmatprep.subr.bf16.mxu0 %v959
        %1273 = vmatpush1.bf16.msra.mxu0 %v958
        %1274 = vmatprep.subr.bf16.mxu0 0
        %1275 = vmatpush1.bf16.msra.mxu0 0
        %1276 = vmatprep.subr.bf16.mxu0 0
        %1277 = vmatpush1.bf16.msra.mxu0 0
        %1278 = vmatprep.subr.bf16.mxu0 0
        %1279 = vmatpush1.bf16.msra.mxu0 0
        %1280 = vmatprep.subr.bf16.mxu0 0
        %1281 = vmatpush1.bf16.msra.mxu0 0
        %1282 = vmatprep.subr.bf16.mxu0 0
        %1283 = vmatpush1.bf16.msra.mxu0 0
        %1284 = vmatprep.subr.bf16.mxu0 0
        %1285 = vmatpush1.bf16.msra.mxu0 0
        %1286 = vmatprep.subr.bf16.mxu0 0
        %1287 = vmatpush1.bf16.msra.mxu0 0
        %1288 = vmatprep.subr.bf16.mxu0 0
        %1289 = vmatpush1.bf16.msra.mxu0 0
        %1290 = vmatprep.mubr.bf16.mxu0 0
        %1291 = vmatmul.mubr.bf16.gmra.mrb[0].mxu0 %v241
        %v1292 = vpop.f32.mrb[0].mxu0
        %v1293 = vadd.f32 %v409, %v1292
        %v1294 = vpop.f32.mrb[0].mxu0
        %v1295 = vadd.f32 %v413, %v1294
        %v1296 = vpop.f32.mrb[0].mxu0
        %v1297 = vpop.f32.mrb[0].mxu0
        %1298 = vdwg.mxu0
        %1299 = vmatprep.subr.bf16.mxu0 %v849
        %1300 = vmatpush1.bf16.msra.mxu0 %v848
        %1301 = vmatprep.subr.bf16.mxu0 %v865
        %1302 = vmatpush1.bf16.msra.mxu0 %v864
        %1303 = vmatprep.subr.bf16.mxu0 %v881
        %1304 = vmatpush1.bf16.msra.mxu0 %v880
        %1305 = vmatprep.subr.bf16.mxu0 %v897
        %1306 = vmatpush1.bf16.msra.mxu0 %v896
        %1307 = vmatprep.subr.bf16.mxu0 %v913
        %1308 = vmatpush1.bf16.msra.mxu0 %v912
        %1309 = vmatprep.subr.bf16.mxu0 %v929
        %1310 = vmatpush1.bf16.msra.mxu0 %v928
        %1311 = vmatprep.subr.bf16.mxu0 %v945
        %1312 = vmatpush1.bf16.msra.mxu0 %v944
        %1313 = vmatprep.subr.bf16.mxu0 %v961
        %1314 = vmatpush1.bf16.msra.mxu0 %v960
        %1315 = vmatprep.subr.bf16.mxu0 0
        %1316 = vmatpush1.bf16.msra.mxu0 0
        %1317 = vmatprep.subr.bf16.mxu0 0
        %1318 = vmatpush1.bf16.msra.mxu0 0
        %1319 = vmatprep.subr.bf16.mxu0 0
        %1320 = vmatpush1.bf16.msra.mxu0 0
        %1321 = vmatprep.subr.bf16.mxu0 0
        %1322 = vmatpush1.bf16.msra.mxu0 0
        %1323 = vmatprep.subr.bf16.mxu0 0
        %1324 = vmatpush1.bf16.msra.mxu0 0
        %1325 = vmatprep.subr.bf16.mxu0 0
        %1326 = vmatpush1.bf16.msra.mxu0 0
        %1327 = vmatprep.subr.bf16.mxu0 0
        %1328 = vmatpush1.bf16.msra.mxu0 0
        %1329 = vmatprep.subr.bf16.mxu0 0
        %1330 = vmatpush1.bf16.msra.mxu0 0
        %1331 = vmatprep.mubr.bf16.mxu0 0
        %1332 = vmatmul.mubr.bf16.gmra.mrb[0].mxu0 %v241
        %v1333 = vpop.f32.mrb[0].mxu0
        %v1334 = vadd.f32 %v417, %v1333
        %v1335 = vpop.f32.mrb[0].mxu0
        %v1336 = vadd.f32 %v421, %v1335
        %v1337 = vpop.f32.mrb[0].mxu0
        %v1338 = vpop.f32.mrb[0].mxu0
        %1339 = vdwg.mxu0
        %1340 = vmatprep.subr.bf16.mxu0 %v851
        %1341 = vmatpush1.bf16.msra.mxu0 %v850
        %1342 = vmatprep.subr.bf16.mxu0 %v867
        %1343 = vmatpush1.bf16.msra.mxu0 %v866
        %1344 = vmatprep.subr.bf16.mxu0 %v883
        %1345 = vmatpush1.bf16.msra.mxu0 %v882
        %1346 = vmatprep.subr.bf16.mxu0 %v899
        %1347 = vmatpush1.bf16.msra.mxu0 %v898
        %1348 = vmatprep.subr.bf16.mxu0 %v915
        %1349 = vmatpush1.bf16.msra.mxu0 %v914
        %1350 = vmatprep.subr.bf16.mxu0 %v931
        %1351 = vmatpush1.bf16.msra.mxu0 %v930
        %1352 = vmatprep.subr.bf16.mxu0 %v947
        %1353 = vmatpush1.bf16.msra.mxu0 %v946
        %1354 = vmatprep.subr.bf16.mxu0 %v963
        %1355 = vmatpush1.bf16.msra.mxu0 %v962
        %1356 = vmatprep.subr.bf16.mxu0 0
        %1357 = vmatpush1.bf16.msra.mxu0 0
        %1358 = vmatprep.subr.bf16.mxu0 0
        %1359 = vmatpush1.bf16.msra.mxu0 0
        %1360 = vmatprep.subr.bf16.mxu0 0
        %1361 = vmatpush1.bf16.msra.mxu0 0
        %1362 = vmatprep.subr.bf16.mxu0 0
        %1363 = vmatpush1.bf16.msra.mxu0 0
        %1364 = vmatprep.subr.bf16.mxu0 0
        %1365 = vmatpush1.bf16.msra.mxu0 0
        %1366 = vmatprep.subr.bf16.mxu0 0
        %1367 = vmatpush1.bf16.msra.mxu0 0
        %1368 = vmatprep.subr.bf16.mxu0 0
        %1369 = vmatpush1.bf16.msra.mxu0 0
        %1370 = vmatprep.subr.bf16.mxu0 0
        %1371 = vmatpush1.bf16.msra.mxu0 0
        %1372 = vmatprep.mubr.bf16.mxu0 0
        %1373 = vmatmul.mubr.bf16.gmra.mrb[0].mxu0 %v241
        %v1374 = vpop.f32.mrb[0].mxu0
        %v1375 = vadd.f32 %v425, %v1374
        %v1376 = vpop.f32.mrb[0].mxu0
        %v1377 = vadd.f32 %v429, %v1376
        %v1378 = vpop.f32.mrb[0].mxu0
        %v1379 = vpop.f32.mrb[0].mxu0
        %1380 = vdwg.mxu0
        %1381 = vmatprep.subr.bf16.mxu0 %v853
        %1382 = vmatpush1.bf16.msra.mxu0 %v852
        %1383 = vmatprep.subr.bf16.mxu0 %v869
        %1384 = vmatpush1.bf16.msra.mxu0 %v868
        %1385 = vmatprep.subr.bf16.mxu0 %v885
        %1386 = vmatpush1.bf16.msra.mxu0 %v884
        %1387 = vmatprep.subr.bf16.mxu0 %v901
        %1388 = vmatpush1.bf16.msra.mxu0 %v900
        %1389 = vmatprep.subr.bf16.mxu0 %v917
        %1390 = vmatpush1.bf16.msra.mxu0 %v916
        %1391 = vmatprep.subr.bf16.mxu0 %v933
        %1392 = vmatpush1.bf16.msra.mxu0 %v932
        %1393 = vmatprep.subr.bf16.mxu0 %v949
        %1394 = vmatpush1.bf16.msra.mxu0 %v948
        %1395 = vmatprep.subr.bf16.mxu0 %v965
        %1396 = vmatpush1.bf16.msra.mxu0 %v964
        %1397 = vmatprep.subr.bf16.mxu0 0
        %1398 = vmatpush1.bf16.msra.mxu0 0
        %1399 = vmatprep.subr.bf16.mxu0 0
        %1400 = vmatpush1.bf16.msra.mxu0 0
        %1401 = vmatprep.subr.bf16.mxu0 0
        %1402 = vmatpush1.bf16.msra.mxu0 0
        %1403 = vmatprep.subr.bf16.mxu0 0
        %1404 = vmatpush1.bf16.msra.mxu0 0
        %1405 = vmatprep.subr.bf16.mxu0 0
        %1406 = vmatpush1.bf16.msra.mxu0 0
        %1407 = vmatprep.subr.bf16.mxu0 0
        %1408 = vmatpush1.bf16.msra.mxu0 0
        %1409 = vmatprep.subr.bf16.mxu0 0
        %1410 = vmatpush1.bf16.msra.mxu0 0
        %1411 = vmatprep.subr.bf16.mxu0 0
        %1412 = vmatpush1.bf16.msra.mxu0 0
        %1413 = vmatprep.mubr.bf16.mxu0 0
        %1414 = vmatmul.mubr.bf16.gmra.mrb[0].mxu0 %v241
        %v1415 = vpop.f32.mrb[0].mxu0
        %v1416 = vadd.f32 %v433, %v1415
        %v1417 = vpop.f32.mrb[0].mxu0
        %v1418 = vadd.f32 %v437, %v1417
        %v1419 = vpop.f32.mrb[0].mxu0
        %v1420 = vpop.f32.mrb[0].mxu0
        %1421 = vdwg.mxu0
        %1422 = vst [vmem:[%s236] sm:$0xff] %v1129
        %1423 = vst [vmem:[%s236 + $0x8] sm:$0xff] %v1131
        %1424 = vst [vmem:[%s236 + $0x10] sm:$0xff] %v1170
        %1425 = vst [vmem:[%s236 + $0x18] sm:$0xff] %v1172
        %1426 = vst [vmem:[%s236 + $0x20] sm:$0xff] %v1211
        %1427 = vst [vmem:[%s236 + $0x28] sm:$0xff] %v1213
        %1428 = vst [vmem:[%s236 + $0x30] sm:$0xff] %v1252
        %1429 = vst [vmem:[%s236 + $0x38] sm:$0xff] %v1254
        %1430 = vst [vmem:[%s236 + $0x40] sm:$0xff] %v1293
        %1431 = vst [vmem:[%s236 + $0x48] sm:$0xff] %v1295
        %1432 = vst [vmem:[%s236 + $0x50] sm:$0xff] %v1334
        %1433 = vst [vmem:[%s236 + $0x58] sm:$0xff] %v1336
        %1434 = vst [vmem:[%s236 + $0x60] sm:$0xff] %v1375
        %1435 = vst [vmem:[%s236 + $0x68] sm:$0xff] %v1377
        %1436 = vst [vmem:[%s236 + $0x70] sm:$0xff] %v1416
        %1437 = vst [vmem:[%s236 + $0x78] sm:$0xff] %v1418
        %s1438 = sand.u32 %s102, 1
        %s1439 = scalar_lea.sflag [#allocation4], %s1438
        %s1440 = sand.u32 %s102, 1
        %s1441 = smul.addr %s1440, 128
        %s1442 = scalar_lea.vmem [#allocation8], %s1441
        // Predicated region
        $region45: #{tpu_custom_call.1} parent=31 // pred_check
          %p1443 = pneg %p112
        $region46: #{tpu_custom_call.1} parent=31 // pred_check_branch
          %1445 = sbr.rel (%p1443) target = $region48
        $region47: #{tpu_custom_call.1} parent=31 // pred_region
          %s1446 = smul.u32 16, %s21
          %s1448 = ssub.s32 2048, 2048
          %1449 = vsyncadd %s1439, %s1448
          %s1450 = smul.addr %s1446, 128
          %s1451 = scalar_lea.hbm %s3, %s1450
          %s1453 = sshll.u32 %s1442, 4
          %s1454 = int_to_ptr.vmem [resolvable:$true] %s1453
          %1456 = dma.vmem_to_hbm [thread:$0]  %s1454, 2048, %s1451, %s1439
        $region48: #{tpu_custom_call.1} parent=31 // pred_fallthru
          _
      $region32: #{tpu_custom_call.1} parent=5 // pred_fallthru
        _
      %p1457 = scmp.le.s32.totalorder 2, %s16
      // Predicated region
      $region49: #{tpu_custom_call.1} parent=5 // pred_check
        %p1458 = pneg %p1457
      $region50: #{tpu_custom_call.1} parent=5 // pred_check_branch
        %1460 = sbr.rel (%p1458) target = $region52
      $region51: #{tpu_custom_call.1} parent=5 // pred_region
        %s1461 = ssub.s32 %s16, 2
        // Predicated region
        $region53: #{tpu_custom_call.1} parent=51 // pred_check
          %p1462 = pneg %p118
        $region54: #{tpu_custom_call.1} parent=51 // pred_check_branch
          %1464 = sbr.rel (%p1462) target = $region56
        $region55: #{tpu_custom_call.1} parent=51 // pred_region
          %s1465 = sand.u32 %s103, 1
          %s1466 = scalar_lea.sflag [#allocation4], %s1465
          %s1467 = sand.u32 %s103, 1
          %s1468 = smul.addr %s1467, 128
          %s1469 = scalar_lea.vmem [#allocation8], %s1468
          %1470 = dma.done %s1466, 2048
        $region56: #{tpu_custom_call.1} parent=51 // pred_fallthru
          _
      $region52: #{tpu_custom_call.1} parent=5 // pred_fallthru
        _
    $region6: #{tpu_custom_call.1} parent=1 // loop_footer
      %s20 = sadd.s32 1, %s16
    $region7: #{tpu_custom_call.1} parent=1 // loop_footer_branch
      %15 = sbr.rel target = $region3
    $region8: #{tpu_custom_call.1} parent=1 // loop_exit
      _
    %1471 = vsyncpa [#allocation3], 1
    %s1472 = scalar_lea.sflag [#allocation3], 1
    %1473 = vsyncpa %s1472, 1
    %1474 = vsyncpa [#allocation6], 1
    %s1475 = scalar_lea.sflag [#allocation6], 1
    %1476 = vsyncpa %s1475, 1
    %1477 = vsyncpa [#allocation4], 1
    %s1478 = scalar_lea.sflag [#allocation4], 1
    %1479 = vsyncpa %s1478, 1

</llo_original>
